<compile_context>
chip_gen: v6e
topology: v6e:2x2x1
jax: 0.10.0
libtpu: 0.0.40
codegen_flags: <defaults>
</compile_context>

<pallas_src>
import jax
import jax.numpy as jnp
from jax.experimental import pallas as pl
from jax.experimental.pallas import tpu as pltpu


# ------------------------------------------------------------------ kernel --

def _has_native_bf16_vpu():
    """v6e / v7x have bf16 VALU + EUP; v5e and older do not."""
    try:
        kind = jax.devices()[0].device_kind.lower()
    except Exception:
        return False
    return ("v6" in kind) or ("v7" in kind) or ("tpu7" in kind)


def _compute_dtype_for(dtype):
    if dtype == jnp.bfloat16 and _has_native_bf16_vpu():
        return jnp.bfloat16
    return jnp.float32


def _make_silu_kernel(compute_dtype):
    approx = compute_dtype != jnp.float32

    def kernel(x_ref, o_ref):
        x = x_ref[...].astype(compute_dtype)
        e = jnp.exp(-x)                                    # EUP slot (bf16-native on v6e/v7x)
        # pl.reciprocal lowering wants f32; for f32 compute the casts are no-ops.
        inv = pl.reciprocal(e.astype(jnp.float32) + 1.0, approx=approx)
        y = x * inv.astype(compute_dtype)                  # VPU
        o_ref[...] = y.astype(o_ref.dtype)

    return kernel


# ---------------------------------------------------------------- tiling ----

_SINGLE_BLOCK_BYTES = 512 << 10     # <= 512 KiB: one full-array block, no grid
_TARGET_BLOCK_BYTES = 4 << 20       # ~4 MiB tiles for the pipelined path
_MIN_GRID_STEPS = 4                 # keep both v7x TCs busy on the parallel axis
_VMEM_LIMIT_CAP = 32 << 20          # <= v7x physical (64 MiB), > v5e default (16 MiB)


def _pick_lanes(n):
    """Widest lane count in {2048..128} dividing n, preferring rows >= 8 so the
    (rows, lanes) slab fully populates (8,128) vregs."""
    for lanes in (2048, 1024, 512, 256, 128):
        if n % lanes == 0 and n // lanes >= 8:
            return lanes
    for lanes in (2048, 1024, 512, 256, 128):
        if n % lanes == 0:
            return lanes
    return None


def _pick_block_rows(rows, lanes, itemsize):
    """Block rows targeting ~4 MiB blocks, sublane-aligned, with >= _MIN_GRID_STEPS
    grid steps. No divisibility requirement — the grid uses pl.cdiv."""
    target_rows = max(8, _TARGET_BLOCK_BYTES // (lanes * itemsize))
    steps = max(_MIN_GRID_STEPS, pl.cdiv(rows, target_rows))
    block_rows = pl.cdiv(rows, steps)
    block_rows = ((block_rows + 7) // 8) * 8              # sublane-align
    return max(8, block_rows)


def _single_block_call(x2d, kernel):
    """Whole (small) array as one block; dims equal the full array, so exempt
    from the (8,128) divisibility rule. No grid -> no per-step overhead."""
    return pl.pallas_call(
        kernel,
        out_shape=jax.ShapeDtypeStruct(x2d.shape, x2d.dtype),
    )(x2d)


def _tiled_call(x2d, rows, lanes, block_rows, dtype, kernel):
    """Lane-dense (rows, lanes) slab, ~4 MiB double-buffered blocks, cdiv grid
    (partial last block is masked), parallel axis for megacore sharding."""
    itemsize = jnp.dtype(dtype).itemsize
    block_bytes = block_rows * lanes * itemsize
    # in + out, double-buffered, plus headroom; capped for v7x's 64 MiB VMEM.
    vmem_limit = int(min(_VMEM_LIMIT_CAP, max(16 << 20, 4 * block_bytes + (4 << 20))))
    grid = (pl.cdiv(rows, block_rows),)
    return pl.pallas_call(
        kernel,
        out_shape=jax.ShapeDtypeStruct((rows, lanes), dtype),
        grid_spec=pltpu.PrefetchScalarGridSpec(
            num_scalar_prefetch=0,
            grid=grid,
            in_specs=[pl.BlockSpec((block_rows, lanes), lambda i: (i, 0))],
            out_specs=pl.BlockSpec((block_rows, lanes), lambda i: (i, 0)),
        ),
        compiler_params=pltpu.CompilerParams(
            dimension_semantics=("parallel",),   # shard steps across v7x's 2 TCs
            vmem_limit_bytes=vmem_limit,
        ),
    )(x2d)


# --------------------------------------------------------------- forward ----

def custom_lambda_forward(x):
    """Applies custom_fn (x * sigmoid(x)) elementwise via a Pallas TPU kernel."""
    orig_shape = x.shape
    dtype = x.dtype
    n = int(x.size)
    itemsize = jnp.dtype(dtype).itemsize
    kernel = _make_silu_kernel(_compute_dtype_for(dtype))

    x_flat = jnp.reshape(x, (-1,))
    lanes = _pick_lanes(n)

    if lanes is not None:
        rows = n // lanes
        x2d = jnp.reshape(x_flat, (rows, lanes))           # free, contiguous
        if n * itemsize <= _SINGLE_BLOCK_BYTES:
            out2d = _single_block_call(x2d, kernel)
        else:
            block_rows = _pick_block_rows(rows, lanes, itemsize)
            out2d = _tiled_call(x2d, rows, lanes, block_rows, dtype, kernel)
        return jnp.reshape(out2d, orig_shape)

    # --- rare fallback: element count not a multiple of 128 ---
    if n * itemsize <= _SINGLE_BLOCK_BYTES:
        out2d = _single_block_call(jnp.reshape(x_flat, (1, n)), kernel)
        return jnp.reshape(out2d, orig_shape)

    # TODO(synk): a 128-aligned bulk + tiny-tail split would avoid the extra
    # HBM copy from the pad/slice below; kept simple since this path is rare.
    pad = (-n) % 128
    x_pad = jnp.concatenate([x_flat, jnp.zeros((pad,), dtype=dtype)])
    rows = (n + pad) // 128
    block_rows = _pick_block_rows(rows, 128, itemsize)
    out2d = _tiled_call(jnp.reshape(x_pad, (rows, 128)), rows, 128, block_rows,
                        dtype, kernel)
    out_flat = jnp.reshape(out2d, (-1,))[:n]
    return jnp.reshape(out_flat, orig_shape)


# ------------------------------------------------------------------- main ---

if __name__ == "__main__":
    key = jax.random.PRNGKey(0)
    k0, k1, k2 = jax.random.split(key, 3)

    def ref_fn(x):
        return x * jax.nn.sigmoid(x)

    # Small NCHW input (single-block, sublane-dense (8,256) path): 2x4x16x16.
    x_small = jax.random.normal(k0, (2, 4, 16, 16), dtype=jnp.float32)
    out_small = custom_lambda_forward(x_small)
    jax.block_until_ready(out_small)
    assert out_small.shape == x_small.shape and out_small.dtype == x_small.dtype
    assert jnp.max(jnp.abs(out_small - ref_fn(x_small))) < 5e-5

    # Medium input (pipelined tiled path, >=4 grid steps): 2x64x64x64 = 2 MiB f32.
    x_med = jax.random.normal(k1, (2, 64, 64, 64), dtype=jnp.float32)
    out_med = custom_lambda_forward(x_med)
    jax.block_until_ready(out_med)
    assert out_med.shape == x_med.shape and out_med.dtype == x_med.dtype
    assert jnp.max(jnp.abs(out_med - ref_fn(x_med))) < 5e-5

    # Odd-sized input (non-128-divisible fallback): 3x5x7 = 105 elements.
    x_odd = jax.random.normal(k2, (3, 5, 7), dtype=jnp.float32)
    out_odd = custom_lambda_forward(x_odd)
    jax.block_until_ready(out_odd)
    assert out_odd.shape == x_odd.shape and out_odd.dtype == x_odd.dtype
    assert jnp.max(jnp.abs(out_odd - ref_fn(x_odd))) < 5e-5

    print("KERNEL_OK")
</pallas_src>

<mosaic_0001>
module attributes {stable_mosaic.version = 11 : i64} {
  func.func @kernel(%arg0: memref<8x256xf32, #tpu.memory_space<vmem>>, %arg1: memref<8x256xf32, #tpu.memory_space<vmem>>) attributes {dimension_semantics = [], scalar_prefetch = 0 : i64, scratch_operands = 0 : i64, tpu.core_type = #tpu.core_type<tc>} {
    %c0 = arith.constant 0 : index
    %c0_0 = arith.constant 0 : index
    %0 = vector.load %arg0[%c0, %c0_0] : memref<8x256xf32, #tpu.memory_space<vmem>>, vector<8x256xf32>
    %cst = arith.constant 0.000000e+00 : f32
    %1 = vector.broadcast %cst : f32 to vector<8x256xf32>
    %2 = arith.subf %1, %0 : vector<8x256xf32>
    %3 = math.exp %2 : vector<8x256xf32>
    %cst_1 = arith.constant 1.000000e+00 : f32
    %4 = vector.broadcast %cst_1 : f32 to vector<8x256xf32>
    %5 = arith.addf %3, %4 : vector<8x256xf32>
    %6 = tpu.reciprocal %5 : vector<8x256xf32> -> vector<8x256xf32>
    %7 = arith.mulf %0, %6 : vector<8x256xf32>
    %c0_2 = arith.constant 0 : index
    %c0_3 = arith.constant 0 : index
    %8 = vector.load %arg1[%c0_2, %c0_3] : memref<8x256xf32, #tpu.memory_space<vmem>>, vector<8x256xf32>
    tpu.vector_store %arg1[%c0_2, %c0_3], %7 {strides = array<i32>} : memref<8x256xf32, #tpu.memory_space<vmem>>, vector<8x256xf32>,
    return
  }
}

</mosaic_0001>

<llo_original>
// kernel: tpu_custom_call.1
$region0: #{tpu_custom_call.1}
  #allocation0 [shape = 'u32[]', space=smem, size = 0x4, offset = 0x4, fixed_abs, tag = 'smem constant byte address 0x4 - core index']
  #allocation1 [shape = 'u32[144,128]{1,0:T(1,128)}', space=vmem, size = 0x12000, scoped, tag = 'internal scratch']
  %s0 = inlined_call_operand.hbm [shape: f32[8,256], index: 0, kind: input, shape index: {}]
  %s1 = inlined_call_operand.hbm [shape: f32[8,256], index: 1, kind: output, shape index: {}]
  %s2 = sld [smem:[#allocation0]]
  $region18: #{tpu_custom_call.1} parent=0
    _
  %s4 = ssub.s32 1, %s2
  %s5 = scalar_select 0, %s4, %s2
  $region1: #{tpu_custom_call.1} parent=0
    #allocation2 [shape = 'u8[8192]{0}', space=vmem, size = 0x2000, scoped, tag = 'input window, operand 0, single buffered']
    #allocation3 [shape = 's32[1]{0}', space=sflag, size = 0x4, scoped, tag = 'scoped memory for tpu_custom_call.1']
    #allocation4 [shape = 's32[1]{0}', space=sflag, size = 0x4, scoped, tag = 'scoped memory for tpu_custom_call.1']
    #allocation5 [shape = 'u8[8192]{0}', space=vmem, size = 0x2000, scoped, tag = 'output window, operand 0, single buffered']
    %6 = vsyncpa [#allocation3], 0
    %7 = vsyncpa [#allocation4], 0
    // Predicated region
    $region2: #{tpu_custom_call.1} parent=1 // pred_check
      _
    $region3: #{tpu_custom_call.1} parent=1 // pred_check_branch
      %9 = sbr.rel (0) target = $region5
    $region4: #{tpu_custom_call.1} parent=1 // pred_region
      %s11 = ssub.s32 256, 256
      %12 = vsyncadd [#allocation3], %s11
      %s14 = sshll.u32 [#allocation2], 4
      %s15 = int_to_ptr.vmem [resolvable:$true] %s14
      %17 = dma.hbm_to_vmem [thread:$0]  %s0, 256, %s15, [#allocation3]
    $region5: #{tpu_custom_call.1} parent=1 // pred_fallthru
      _
    // Predicated region
    $region6: #{tpu_custom_call.1} parent=1 // pred_check
      _
    $region7: #{tpu_custom_call.1} parent=1 // pred_check_branch
      %19 = sbr.rel (0) target = $region9
    $region8: #{tpu_custom_call.1} parent=1 // pred_region
      %20 = dma.done [#allocation3], 256
    $region9: #{tpu_custom_call.1} parent=1 // pred_fallthru
      _
    %v21 = vld [vmem:[#allocation2] sm:$0xff]
    %v22 = vld [vmem:[#allocation2 + $0x8] sm:$0xff]
    %v23 = vsub.f32 0.0, %v21
    %v24 = vsub.f32 0.0, %v22
    %v25 = vmul.f32 %v23, 1.442695
    %v26 = vpow.pop %v25
    %v27 = vmul.f32 %v24, 1.442695
    %v28 = vpow.pop %v27
    %v29 = vadd.f32 %v26, 1.0
    %v30 = vadd.f32 %v28, 1.0
    %v31 = vrcp.pop %v29
    %v32 = vrcp.pop %v30
    %v33 = vmul.f32 %v21, %v31
    %v34 = vmul.f32 %v22, %v32
    %35 = vst [vmem:[#allocation5] sm:$0xff] %v33
    %36 = vst [vmem:[#allocation5 + $0x8] sm:$0xff] %v34
    // Predicated region
    $region10: #{tpu_custom_call.1} parent=1 // pred_check
      _
    $region11: #{tpu_custom_call.1} parent=1 // pred_check_branch
      %38 = sbr.rel (0) target = $region13
    $region12: #{tpu_custom_call.1} parent=1 // pred_region
      %s40 = ssub.s32 256, 256
      %41 = vsyncadd [#allocation4], %s40
      %s43 = sshll.u32 [#allocation5], 4
      %s44 = int_to_ptr.vmem [resolvable:$true] %s43
      %46 = dma.vmem_to_hbm [thread:$0]  %s44, 256, %s1, [#allocation4]
    $region13: #{tpu_custom_call.1} parent=1 // pred_fallthru
      _
    // Predicated region
    $region14: #{tpu_custom_call.1} parent=1 // pred_check
      _
    $region15: #{tpu_custom_call.1} parent=1 // pred_check_branch
      %48 = sbr.rel (0) target = $region17
    $region16: #{tpu_custom_call.1} parent=1 // pred_region
      %49 = dma.done [#allocation4], 256
    $region17: #{tpu_custom_call.1} parent=1 // pred_fallthru
      _
    %50 = vsyncpa [#allocation3], 1
    %51 = vsyncpa [#allocation4], 1

</llo_original>
